<compile_context>
chip_gen: v7x
topology: tpu7x:2x2x1
jax: 0.10.0
libtpu: 0.0.40
codegen_flags: <defaults>
</compile_context>

<pallas_src>
import functools

import jax
import jax.numpy as jnp
from jax import lax
from jax.experimental import pallas as pl
from jax.experimental.pallas import tpu as pltpu

EPS = 1e-5


# ---------------------------------------------------------------------------
# Pallas kernel: out_tile = relu( p_tile @ w + bias )
# ---------------------------------------------------------------------------
def _matmul_bias_relu_kernel(p_ref, w_ref, b_ref, o_ref):
    y = jnp.dot(p_ref[...], w_ref[...], preferred_element_type=jnp.float32)
    o_ref[...] = jnp.maximum(y + b_ref[...], 0.0).astype(o_ref.dtype)


def _matmul_bias_relu(patches_bf16, w_bf16, bias_f32, tile_m):
    """patches: (M_pad, K_pad) bf16, w: (K_pad, N_pad) bf16, bias: (1, N_pad) f32."""
    m_pad, k_pad = patches_bf16.shape
    n_pad = w_bf16.shape[1]
    assert m_pad % tile_m == 0 and k_pad % 128 == 0 and n_pad % 128 == 0

    # ~2x (double-buffered input tile + output tile) + resident weights/bias + headroom
    vmem_bytes = (2 * tile_m * k_pad * 2          # bf16 patch tiles (double buffered)
                  + 2 * tile_m * n_pad * 4        # f32 output tiles (double buffered)
                  + k_pad * n_pad * 2             # resident bf16 weights
                  + n_pad * 4)                    # resident f32 bias
    vmem_limit = int(min(2 * vmem_bytes + (4 << 20), 96 << 20))

    return pl.pallas_call(
        _matmul_bias_relu_kernel,
        out_shape=jax.ShapeDtypeStruct((m_pad, n_pad), jnp.float32),
        grid=(m_pad // tile_m,),
        in_specs=[
            pl.BlockSpec((tile_m, k_pad), lambda i: (i, 0)),   # streamed row tiles
            pl.BlockSpec((k_pad, n_pad), lambda i: (0, 0)),    # resident weights
            pl.BlockSpec((1, n_pad), lambda i: (0, 0)),        # resident bias
        ],
        out_specs=pl.BlockSpec((tile_m, n_pad), lambda i: (i, 0)),
        compiler_params=pltpu.CompilerParams(
            dimension_semantics=("parallel",),
            vmem_limit_bytes=vmem_limit),
    )(patches_bf16, w_bf16, bias_f32)


# ---------------------------------------------------------------------------
# Glue: im2col, weight flattening, BN folding, padding (plain JAX)
# ---------------------------------------------------------------------------
def _round_up(x, m):
    return (x + m - 1) // m * m


def _pad2(a, rows, cols):
    return jnp.pad(a, ((0, rows - a.shape[0]), (0, cols - a.shape[1])))


def _im2col_nhwc(x_nhwc, ksize, stride, pad):
    """Extract (kh, kw, c)-ordered patches. Returns (N*Ho*Wo, K*K*C), plus Ho, Wo."""
    n, h, w, c = x_nhwc.shape
    xp = jnp.pad(x_nhwc, ((0, 0), (pad, pad), (pad, pad), (0, 0)))
    ho = (h + 2 * pad - ksize) // stride + 1
    wo = (w + 2 * pad - ksize) // stride + 1
    cols = []
    for kh in range(ksize):
        for kw in range(ksize):
            cols.append(xp[:, kh:kh + stride * ho:stride, kw:kw + stride * wo:stride, :])
    patches = jnp.concatenate(cols, axis=-1)          # (N, Ho, Wo, K*K*C)
    return patches.reshape(n * ho * wo, ksize * ksize * c), ho, wo


def _flatten_weight_oihw(w_oihw):
    """(C_out, C_in, KH, KW) -> (KH*KW*C_in, C_out) matching _im2col_nhwc ordering."""
    c_out, c_in, kh, kw = w_oihw.shape
    return jnp.transpose(w_oihw, (2, 3, 1, 0)).reshape(kh * kw * c_in, c_out)


def _fold_bn_into_weight(w_flat, gamma, beta, mean, var):
    """Fold eval-mode BN into the matmul: (x@w)*s + b == x@(w*s) + b."""
    inv = (gamma / jnp.sqrt(var + EPS)).astype(jnp.float32)
    w_scaled = w_flat.astype(jnp.float32) * inv[None, :]
    bias = (beta - mean * inv).astype(jnp.float32)
    return w_scaled, bias


def convolutional_block(x_nchw, params, tile_m=256):
    """Forward of ConvolutionalBlock. Input/output NCHW, float32."""
    n, c_in, h, w = x_nchw.shape
    c_out = params["w1"].shape[0]
    x_nhwc = jnp.transpose(x_nchw, (0, 2, 3, 1)).astype(jnp.float32)

    # ---- stage 1: conv1 (3x3, s2, p1) + bn1 + relu ----
    p1, ho, wo = _im2col_nhwc(x_nhwc, ksize=3, stride=2, pad=1)     # (rows, 9*C_in)
    rows = p1.shape[0]

    w1, b1 = _fold_bn_into_weight(_flatten_weight_oihw(params["w1"]), *params["bn1"])

    n_pad = _round_up(c_out, 128)
    tm = tile_m if rows >= tile_m else _round_up(rows, 8)
    m_pad = _round_up(rows, tm)
    k1_pad = _round_up(p1.shape[1], 128)

    p1p = _pad2(p1, m_pad, k1_pad).astype(jnp.bfloat16)
    w1p = _pad2(w1, k1_pad, n_pad).astype(jnp.bfloat16)
    b1p = _pad2(b1.reshape(1, -1), 1, n_pad)

    y1 = _matmul_bias_relu(p1p, w1p, b1p, tm)                       # (m_pad, n_pad) f32
    y1_nhwc = y1[:rows, :c_out].reshape(n, ho, wo, c_out)

    # ---- stage 2: conv2 (3x3, s1, p1) + bn2, fused with downsample (1x1, s2) + bn3, add, relu
    p2, _, _ = _im2col_nhwc(y1_nhwc, ksize=3, stride=1, pad=1)      # (rows, 9*C_out)
    xs = x_nhwc[:, ::2, ::2, :].reshape(rows, c_in)                 # 1x1 s2 shortcut input
    p2cat = jnp.concatenate([p2, xs], axis=-1)                      # (rows, 9*C_out + C_in)

    w2, b2 = _fold_bn_into_weight(_flatten_weight_oihw(params["w2"]), *params["bn2"])
    w3, b3 = _fold_bn_into_weight(_flatten_weight_oihw(params["w3"]), *params["bn3"])
    wcat = jnp.concatenate([w2, w3], axis=0)                        # (9*C_out + C_in, C_out)
    bcat = (b2 + b3).reshape(1, -1)

    k2_pad = _round_up(p2cat.shape[1], 128)
    p2p = _pad2(p2cat, m_pad, k2_pad).astype(jnp.bfloat16)
    w2p = _pad2(wcat, k2_pad, n_pad).astype(jnp.bfloat16)
    b2p = _pad2(bcat, 1, n_pad)

    y2 = _matmul_bias_relu(p2p, w2p, b2p, tm)                       # (m_pad, n_pad) f32
    y2_nhwc = y2[:rows, :c_out].reshape(n, ho, wo, c_out)
    return jnp.transpose(y2_nhwc, (0, 3, 1, 2))                     # back to NCHW


# ---------------------------------------------------------------------------
# Pure-JAX reference (lax.conv, full f32) for correctness check
# ---------------------------------------------------------------------------
def _bn_ref(x_nchw, gamma, beta, mean, var):
    g = gamma.reshape(1, -1, 1, 1)
    b = beta.reshape(1, -1, 1, 1)
    m = mean.reshape(1, -1, 1, 1)
    v = var.reshape(1, -1, 1, 1)
    return (x_nchw - m) / jnp.sqrt(v + EPS) * g + b


def reference_block(x, params):
    dn = ("NCHW", "OIHW", "NCHW")
    y = lax.conv_general_dilated(x, params["w1"], (2, 2), ((1, 1), (1, 1)),
                                 dimension_numbers=dn)
    y = jnp.maximum(_bn_ref(y, *params["bn1"]), 0.0)
    y = lax.conv_general_dilated(y, params["w2"], (1, 1), ((1, 1), (1, 1)),
                                 dimension_numbers=dn)
    y = _bn_ref(y, *params["bn2"])
    sc = lax.conv_general_dilated(x, params["w3"], (2, 2), ((0, 0), (0, 0)),
                                  dimension_numbers=dn)
    sc = _bn_ref(sc, *params["bn3"])
    return jnp.maximum(y + sc, 0.0)


# ---------------------------------------------------------------------------
def _make_params(key, n_in, n_out):
    ks = jax.random.split(key, 6)

    def bn_params(k):
        k1, k2, k3, k4 = jax.random.split(k, 4)
        gamma = 1.0 + 0.1 * jax.random.normal(k1, (n_out,), jnp.float32)
        beta = 0.1 * jax.random.normal(k2, (n_out,), jnp.float32)
        mean = 0.1 * jax.random.normal(k3, (n_out,), jnp.float32)
        var = jnp.abs(jax.random.normal(k4, (n_out,), jnp.float32)) + 0.5
        return (gamma, beta, mean, var)

    return {
        "w1": 0.1 * jax.random.normal(ks[0], (n_out, n_in, 3, 3), jnp.float32),
        "w2": 0.1 * jax.random.normal(ks[1], (n_out, n_out, 3, 3), jnp.float32),
        "w3": 0.1 * jax.random.normal(ks[2], (n_out, n_in, 1, 1), jnp.float32),
        "bn1": bn_params(ks[3]),
        "bn2": bn_params(ks[4]),
        "bn3": bn_params(ks[5]),
    }


if __name__ == "__main__":
    key = jax.random.PRNGKey(0)
    k_x, k_p = jax.random.split(key)

    n_in, n_out = 4, 8
    x = jax.random.normal(k_x, (2, n_in, 16, 16), jnp.float32)   # NCHW, like PyTorch
    params = _make_params(k_p, n_in, n_out)

    out = jax.jit(functools.partial(convolutional_block, params=params))(x)
    out = jax.block_until_ready(out)

    ref = jax.block_until_ready(reference_block(x, params))
    assert out.shape == (2, n_out, 8, 8), out.shape
    # bf16 matmul inputs (f32 accumulation) -> loosened tolerance vs the full-f32 reference.
    assert jnp.allclose(out, ref, rtol=5e-2, atol=5e-2), float(jnp.max(jnp.abs(out - ref)))

    print("KERNEL_OK")
</pallas_src>

<mosaic_0001>
module attributes {stable_mosaic.version = 11 : i64} {
  func.func @_matmul_bias_relu_kernel(%arg0: i32, %arg1: memref<128x128xbf16, #tpu.memory_space<vmem>>, %arg2: memref<128x128xbf16, #tpu.memory_space<vmem>>, %arg3: memref<1x128xf32, #tpu.memory_space<vmem>>, %arg4: memref<128x128xf32, #tpu.memory_space<vmem>>) attributes {dimension_semantics = [#tpu.dimension_semantics<parallel>], iteration_bounds = array<i64: 1>, scalar_prefetch = 0 : i64, scratch_operands = 0 : i64, tpu.core_type = #tpu.core_type<tc>, window_params = [{transform_indices = @transform_0, window_bounds = array<i64: 128, 128>}, {pipeline_mode = #tpu.pipeline_mode<synchronous>, transform_indices = @transform_1, window_bounds = array<i64: 128, 128>}, {pipeline_mode = #tpu.pipeline_mode<synchronous>, transform_indices = @transform_2, window_bounds = array<i64: 1, 128>}, {transform_indices = @transform_3, window_bounds = array<i64: 128, 128>}]} {
    %c0 = arith.constant 0 : index
    %c0_0 = arith.constant 0 : index
    %0 = vector.load %arg1[%c0, %c0_0] : memref<128x128xbf16, #tpu.memory_space<vmem>>, vector<128x128xbf16>
    %c0_1 = arith.constant 0 : index
    %c0_2 = arith.constant 0 : index
    %1 = vector.load %arg2[%c0_1, %c0_2] : memref<128x128xbf16, #tpu.memory_space<vmem>>, vector<128x128xbf16>
    %cst = arith.constant dense<0.000000e+00> : vector<128x128xf32>
    %2 = tpu.matmul %0, %1, %cst {dimension_numbers = #tpu.dot_dimension_numbers<[1], [0], [0], [1], [0, 0, 1, 1], [], []>} : vector<128x128xbf16>, vector<128x128xbf16>, vector<128x128xf32> -> vector<128x128xf32>
    %c0_3 = arith.constant 0 : index
    %c0_4 = arith.constant 0 : index
    %3 = vector.load %arg3[%c0_3, %c0_4] : memref<1x128xf32, #tpu.memory_space<vmem>>, vector<1x128xf32>
    %4 = vector.broadcast %3 : vector<1x128xf32> to vector<128x128xf32>
    %5 = arith.addf %2, %4 : vector<128x128xf32>
    %cst_5 = arith.constant 0.000000e+00 : f32
    %6 = vector.broadcast %cst_5 : f32 to vector<128x128xf32>
    %7 = arith.maximumf %5, %6 : vector<128x128xf32>
    %c0_6 = arith.constant 0 : index
    %c0_7 = arith.constant 0 : index
    %8 = vector.load %arg4[%c0_6, %c0_7] : memref<128x128xf32, #tpu.memory_space<vmem>>, vector<128x128xf32>
    tpu.vector_store %arg4[%c0_6, %c0_7], %7 {strides = array<i32>} : memref<128x128xf32, #tpu.memory_space<vmem>>, vector<128x128xf32>,
    return
  }
  func.func @transform_0(%arg0: i32) -> (i32, i32) {
    %c0_i32 = arith.constant 0 : i32
    %c0_i32_0 = arith.constant 0 : i32
    return %arg0, %c0_i32 : i32, i32
  }
  func.func @transform_1(%arg0: i32) -> (i32, i32) {
    %c0_i32 = arith.constant 0 : i32
    %c0_i32_0 = arith.constant 0 : i32
    %c0_i32_1 = arith.constant 0 : i32
    return %c0_i32, %c0_i32_0 : i32, i32
  }
  func.func @transform_2(%arg0: i32) -> (i32, i32) {
    %c0_i32 = arith.constant 0 : i32
    %c0_i32_0 = arith.constant 0 : i32
    %c0_i32_1 = arith.constant 0 : i32
    return %c0_i32, %c0_i32_0 : i32, i32
  }
  func.func @transform_3(%arg0: i32) -> (i32, i32) {
    %c0_i32 = arith.constant 0 : i32
    %c0_i32_0 = arith.constant 0 : i32
    return %arg0, %c0_i32 : i32, i32
  }
}

</mosaic_0001>

<llo_original>
// kernel: convolutional_block.2
$region0: #{convolutional_block.2}
  #allocation0 [shape = 'u32[]', space=smem, size = 0x4, offset = 0x4, fixed_abs, tag = 'smem constant byte address 0x4 - core index']
  #allocation1 [shape = 'u32[144,128]{1,0:T(1,128)}', space=vmem, size = 0x12000, scoped, tag = 'internal scratch']
  %s0 = inlined_call_operand.vmem [shape: bf16[128,128], index: 0, kind: input, shape index: {}]
  %s1 = inlined_call_operand.vmem [shape: bf16[128,128], index: 1, kind: input, shape index: {}]
  %s2 = inlined_call_operand.vmem [shape: f32[1,128], index: 2, kind: input, shape index: {}]
  %s3 = inlined_call_operand.vmem [shape: f32[128,128], index: 3, kind: output, shape index: {}]
  %s4 = sld [smem:[#allocation0]]
  $region22: #{convolutional_block.2} parent=0
    _
  %s6 = ssub.s32 1, %s4
  %s7 = scalar_select 0, %s6, %s4
  // Predicated region
  $region2: #{convolutional_block.2} parent=0 // pred_check
    _
  $region3: #{convolutional_block.2} parent=0 // pred_check_branch
    %9 = sbr.rel (0) target = $region5
  $region4: #{convolutional_block.2} parent=0 // pred_region
    _
  $region5: #{convolutional_block.2} parent=0 // pred_fallthru
    _
  // Predicated region
  $region6: #{convolutional_block.2} parent=0 // pred_check
    _
  $region7: #{convolutional_block.2} parent=0 // pred_check_branch
    %11 = sbr.rel (0) target = $region9
  $region8: #{convolutional_block.2} parent=0 // pred_region
    _
  $region9: #{convolutional_block.2} parent=0 // pred_fallthru
    _
  // Predicated region
  $region10: #{convolutional_block.2} parent=0 // pred_check
    _
  $region11: #{convolutional_block.2} parent=0 // pred_check_branch
    %13 = sbr.rel (0) target = $region13
  $region12: #{convolutional_block.2} parent=0 // pred_region
    _
  $region13: #{convolutional_block.2} parent=0 // pred_fallthru
    _
  %v15 = vld [vmem:[%s0] sm:$0xf]
  %v16 = vld [vmem:[%s0 + $0x4] sm:$0xf]
  %v17 = vld [vmem:[%s0 + $0x8] sm:$0xf]
  %v18 = vld [vmem:[%s0 + $0xc] sm:$0xf]
  %v19 = vld [vmem:[%s0 + $0x10] sm:$0xf]
  %v20 = vld [vmem:[%s0 + $0x14] sm:$0xf]
  %v21 = vld [vmem:[%s0 + $0x18] sm:$0xf]
  %v22 = vld [vmem:[%s0 + $0x1c] sm:$0xf]
  %v23 = vld [vmem:[%s0 + $0x20] sm:$0xf]
  %v24 = vld [vmem:[%s0 + $0x24] sm:$0xf]
  %v25 = vld [vmem:[%s0 + $0x28] sm:$0xf]
  %v26 = vld [vmem:[%s0 + $0x2c] sm:$0xf]
  %v27 = vld [vmem:[%s0 + $0x30] sm:$0xf]
  %v28 = vld [vmem:[%s0 + $0x34] sm:$0xf]
  %v29 = vld [vmem:[%s0 + $0x38] sm:$0xf]
  %v30 = vld [vmem:[%s0 + $0x3c] sm:$0xf]
  %v31 = vld [vmem:[%s1] sm:$0xf]
  %v32 = vld [vmem:[%s1 + $0x4] sm:$0xf]
  %v33 = vld [vmem:[%s1 + $0x8] sm:$0xf]
  %v34 = vld [vmem:[%s1 + $0xc] sm:$0xf]
  %v35 = vld [vmem:[%s1 + $0x10] sm:$0xf]
  %v36 = vld [vmem:[%s1 + $0x14] sm:$0xf]
  %v37 = vld [vmem:[%s1 + $0x18] sm:$0xf]
  %v38 = vld [vmem:[%s1 + $0x1c] sm:$0xf]
  %v39 = vld [vmem:[%s1 + $0x20] sm:$0xf]
  %v40 = vld [vmem:[%s1 + $0x24] sm:$0xf]
  %v41 = vld [vmem:[%s1 + $0x28] sm:$0xf]
  %v42 = vld [vmem:[%s1 + $0x2c] sm:$0xf]
  %v43 = vld [vmem:[%s1 + $0x30] sm:$0xf]
  %v44 = vld [vmem:[%s1 + $0x34] sm:$0xf]
  %v45 = vld [vmem:[%s1 + $0x38] sm:$0xf]
  %v46 = vld [vmem:[%s1 + $0x3c] sm:$0xf]
  %v47 = vld [vmem:[%s2] sm:$0x1]
  %v49 = vlaneseq
  %v50 = vshrl.u32 %v49, 7
  %v51 = vsub.s32 0, %v50
  %v52 = vrot.slane %v47, %v51
  %v70 = vunpack.c.l.b16 %v15
  %v71 = vunpack.c.l.b16 %v16
  %v72 = vunpack.c.l.b16 %v17
  %v73 = vunpack.c.l.b16 %v18
  %v74 = vunpack.c.l.b16 %v19
  %v75 = vunpack.c.l.b16 %v20
  %v76 = vunpack.c.l.b16 %v21
  %v77 = vunpack.c.l.b16 %v22
  %v78 = vunpack.c.l.b16 %v23
  %v79 = vunpack.c.l.b16 %v24
  %v80 = vunpack.c.l.b16 %v25
  %v81 = vunpack.c.l.b16 %v26
  %v82 = vunpack.c.l.b16 %v27
  %v83 = vunpack.c.l.b16 %v28
  %v84 = vunpack.c.l.b16 %v29
  %v85 = vunpack.c.l.b16 %v30
  %v86 = vpack.c.b16 %v71, %v70
  %v87 = vpack.c.b16 %v73, %v72
  %v88 = vpack.c.b16 %v75, %v74
  %v89 = vpack.c.b16 %v77, %v76
  %v90 = vpack.c.b16 %v79, %v78
  %v91 = vpack.c.b16 %v81, %v80
  %v92 = vpack.c.b16 %v83, %v82
  %v93 = vpack.c.b16 %v85, %v84
  %v118 = vunpack.c.l.b16 %v31
  %v119 = vunpack.c.l.b16 %v32
  %v120 = vunpack.c.l.b16 %v33
  %v121 = vunpack.c.l.b16 %v34
  %v122 = vunpack.c.l.b16 %v35
  %v123 = vunpack.c.l.b16 %v36
  %v124 = vunpack.c.l.b16 %v37
  %v125 = vunpack.c.l.b16 %v38
  %v126 = vunpack.c.l.b16 %v39
  %v127 = vunpack.c.l.b16 %v40
  %v128 = vunpack.c.l.b16 %v41
  %v129 = vunpack.c.l.b16 %v42
  %v130 = vunpack.c.l.b16 %v43
  %v131 = vunpack.c.l.b16 %v44
  %v132 = vunpack.c.l.b16 %v45
  %v133 = vunpack.c.l.b16 %v46
  %v134 = vpack.c.b16 %v119, %v118
  %v135 = vpack.c.b16 %v121, %v120
  %v136 = vpack.c.b16 %v123, %v122
  %v137 = vpack.c.b16 %v125, %v124
  %v138 = vpack.c.b16 %v127, %v126
  %v139 = vpack.c.b16 %v129, %v128
  %v140 = vpack.c.b16 %v131, %v130
  %v141 = vpack.c.b16 %v133, %v132
  %150 = vmatprep.subr.bf16.mxu0 0
  %151 = vmatpush1.bf16.msra.mxu0 %v134
  %152 = vmatprep.subr.bf16.mxu0 0
  %153 = vmatpush1.bf16.msra.mxu0 %v135
  %154 = vmatprep.subr.bf16.mxu0 0
  %155 = vmatpush1.bf16.msra.mxu0 %v136
  %156 = vmatprep.subr.bf16.mxu0 0
  %157 = vmatpush1.bf16.msra.mxu0 %v137
  %158 = vmatprep.subr.bf16.mxu0 0
  %159 = vmatpush1.bf16.msra.mxu0 %v138
  %160 = vmatprep.subr.bf16.mxu0 0
  %161 = vmatpush1.bf16.msra.mxu0 %v139
  %162 = vmatprep.subr.bf16.mxu0 0
  %163 = vmatpush1.bf16.msra.mxu0 %v140
  %164 = vmatprep.subr.bf16.mxu0 0
  %165 = vmatpush1.bf16.msra.mxu0 %v141
  %166 = vmatprep.subr.bf16.mxu0 0
  %167 = vmatpush1.bf16.msra.mxu0 0
  %168 = vmatprep.subr.bf16.mxu0 0
  %169 = vmatpush1.bf16.msra.mxu0 0
  %170 = vmatprep.subr.bf16.mxu0 0
  %171 = vmatpush1.bf16.msra.mxu0 0
  %172 = vmatprep.subr.bf16.mxu0 0
  %173 = vmatpush1.bf16.msra.mxu0 0
  %174 = vmatprep.subr.bf16.mxu0 0
  %175 = vmatpush1.bf16.msra.mxu0 0
  %176 = vmatprep.subr.bf16.mxu0 0
  %177 = vmatpush1.bf16.msra.mxu0 0
  %178 = vmatprep.subr.bf16.mxu0 0
  %179 = vmatpush1.bf16.msra.mxu0 0
  %180 = vmatprep.subr.bf16.mxu0 0
  %181 = vmatpush1.bf16.msra.mxu0 0
  %182 = vmatprep.mubr.bf16.mxu0 0
  %183 = vmatmul.mubr.bf16.gmra.mrb[0].mxu0 %v86
  %v184 = vpop.f32.mrb[0].mxu0
  %v185 = vadd.f32 %v52, %v184
  %v186 = vpop.f32.mrb[0].mxu0
  %v187 = vpop.f32.mrb[0].mxu0
  %v188 = vadd.f32 %v52, %v187
  %v189 = vpop.f32.mrb[0].mxu0
  %190 = vmatprep.mubr.bf16.mxu0 0
  %191 = vmatmul.mubr.bf16.gmra.mrb[0].mxu0 %v87
  %v192 = vpop.f32.mrb[0].mxu0
  %v193 = vadd.f32 %v52, %v192
  %v194 = vpop.f32.mrb[0].mxu0
  %v195 = vpop.f32.mrb[0].mxu0
  %v196 = vadd.f32 %v52, %v195
  %v197 = vpop.f32.mrb[0].mxu0
  %198 = vmatprep.mubr.bf16.mxu0 0
  %199 = vmatmul.mubr.bf16.gmra.mrb[0].mxu0 %v88
  %v200 = vpop.f32.mrb[0].mxu0
  %v201 = vadd.f32 %v52, %v200
  %v202 = vpop.f32.mrb[0].mxu0
  %v203 = vpop.f32.mrb[0].mxu0
  %v204 = vadd.f32 %v52, %v203
  %v205 = vpop.f32.mrb[0].mxu0
  %206 = vmatprep.mubr.bf16.mxu0 0
  %207 = vmatmul.mubr.bf16.gmra.mrb[0].mxu0 %v89
  %v208 = vpop.f32.mrb[0].mxu0
  %v209 = vadd.f32 %v52, %v208
  %v210 = vpop.f32.mrb[0].mxu0
  %v211 = vpop.f32.mrb[0].mxu0
  %v212 = vadd.f32 %v52, %v211
  %v213 = vpop.f32.mrb[0].mxu0
  %214 = vmatprep.mubr.bf16.mxu0 0
  %215 = vmatmul.mubr.bf16.gmra.mrb[0].mxu0 %v90
  %v216 = vpop.f32.mrb[0].mxu0
  %v217 = vadd.f32 %v52, %v216
  %v218 = vpop.f32.mrb[0].mxu0
  %v219 = vpop.f32.mrb[0].mxu0
  %v220 = vadd.f32 %v52, %v219
  %v221 = vpop.f32.mrb[0].mxu0
  %222 = vmatprep.mubr.bf16.mxu0 0
  %223 = vmatmul.mubr.bf16.gmra.mrb[0].mxu0 %v91
  %v224 = vpop.f32.mrb[0].mxu0
  %v225 = vadd.f32 %v52, %v224
  %v226 = vpop.f32.mrb[0].mxu0
  %v227 = vpop.f32.mrb[0].mxu0
  %v228 = vadd.f32 %v52, %v227
  %v229 = vpop.f32.mrb[0].mxu0
  %230 = vmatprep.mubr.bf16.mxu0 0
  %231 = vmatmul.mubr.bf16.gmra.mrb[0].mxu0 %v92
  %v232 = vpop.f32.mrb[0].mxu0
  %v233 = vadd.f32 %v52, %v232
  %v234 = vpop.f32.mrb[0].mxu0
  %v235 = vpop.f32.mrb[0].mxu0
  %v236 = vadd.f32 %v52, %v235
  %v237 = vpop.f32.mrb[0].mxu0
  %238 = vmatprep.mubr.bf16.mxu0 0
  %239 = vmatmul.mubr.bf16.gmra.mrb[0].mxu0 %v93
  %v240 = vpop.f32.mrb[0].mxu0
  %v241 = vadd.f32 %v52, %v240
  %v242 = vpop.f32.mrb[0].mxu0
  %v243 = vpop.f32.mrb[0].mxu0
  %v244 = vadd.f32 %v52, %v243
  %v245 = vpop.f32.mrb[0].mxu0
  %246 = vdwg.mxu0
  %v247 = vmax.f32 %v185, 0.0
  %v248 = vmax.f32 %v188, 0.0
  %v249 = vmax.f32 %v193, 0.0
  %v250 = vmax.f32 %v196, 0.0
  %v251 = vmax.f32 %v201, 0.0
  %v252 = vmax.f32 %v204, 0.0
  %v253 = vmax.f32 %v209, 0.0
  %v254 = vmax.f32 %v212, 0.0
  %v255 = vmax.f32 %v217, 0.0
  %v256 = vmax.f32 %v220, 0.0
  %v257 = vmax.f32 %v225, 0.0
  %v258 = vmax.f32 %v228, 0.0
  %v259 = vmax.f32 %v233, 0.0
  %v260 = vmax.f32 %v236, 0.0
  %v261 = vmax.f32 %v241, 0.0
  %v262 = vmax.f32 %v244, 0.0
  %263 = vst [vmem:[%s3] sm:$0xff] %v247
  %264 = vst [vmem:[%s3 + $0x8] sm:$0xff] %v248
  %265 = vst [vmem:[%s3 + $0x10] sm:$0xff] %v249
  %266 = vst [vmem:[%s3 + $0x18] sm:$0xff] %v250
  %267 = vst [vmem:[%s3 + $0x20] sm:$0xff] %v251
  %268 = vst [vmem:[%s3 + $0x28] sm:$0xff] %v252
  %269 = vst [vmem:[%s3 + $0x30] sm:$0xff] %v253
  %270 = vst [vmem:[%s3 + $0x38] sm:$0xff] %v254
  %271 = vst [vmem:[%s3 + $0x40] sm:$0xff] %v255
  %272 = vst [vmem:[%s3 + $0x48] sm:$0xff] %v256
  %273 = vst [vmem:[%s3 + $0x50] sm:$0xff] %v257
  %274 = vst [vmem:[%s3 + $0x58] sm:$0xff] %v258
  %275 = vst [vmem:[%s3 + $0x60] sm:$0xff] %v259
  %276 = vst [vmem:[%s3 + $0x68] sm:$0xff] %v260
  %277 = vst [vmem:[%s3 + $0x70] sm:$0xff] %v261
  %278 = vst [vmem:[%s3 + $0x78] sm:$0xff] %v262
  // Predicated region
  $region14: #{convolutional_block.2} parent=0 // pred_check
    _
  $region15: #{convolutional_block.2} parent=0 // pred_check_branch
    %280 = sbr.rel (0) target = $region17
  $region16: #{convolutional_block.2} parent=0 // pred_region
    _
  $region17: #{convolutional_block.2} parent=0 // pred_fallthru
    _
  // Predicated region
  $region18: #{convolutional_block.2} parent=0 // pred_check
    _
  $region19: #{convolutional_block.2} parent=0 // pred_check_branch
    %282 = sbr.rel (0) target = $region21
  $region20: #{convolutional_block.2} parent=0 // pred_region
    _
  $region21: #{convolutional_block.2} parent=0 // pred_fallthru
    _

</llo_original>
